<compile_context>
chip_gen: v7x
topology: tpu7x:2x2x1
jax: 0.10.0
libtpu: 0.0.40
codegen_flags: <defaults>
</compile_context>

<pallas_src>
import functools

import jax
import jax.numpy as jnp
from jax import lax
from jax.experimental import pallas as pl
from jax.experimental.pallas import tpu as pltpu


def inverted_residual_kernel(x_ref, w1_ref, b1_ref, w2_ref, b2_ref,
                             w3_ref, b3_ref, mask_ref, o_ref, *, K):
    pad = (K - 1) // 2
    L = x_ref.shape[1]
    cdt = w1_ref.dtype                                   # matmul operand dtype (f32 or bf16)

    x = x_ref[...]                                       # (N*C, L) f32, lane-dense

    # --- expansion: batch-block-diagonal 1x1 conv + bias + tanh -------------------------
    y1 = jnp.dot(w1_ref[...], x.astype(cdt),
                 preferred_element_type=jnp.float32)     # (N*Hid, L)
    y1 = jnp.tanh(y1 + b1_ref[...])

    # --- (1, K) conv along W, padding (K-1)//2 ------------------------------------------
    # tap_k[:, l] = y1[:, l + d] with d = k - pad; out-of-row taps are zeroed by the
    # precomputed lane mask (which also covers the lanes wrapped by the roll, since
    # |d| <= pad < W).  K small MXU dots accumulate in f32 — no im2col concat.
    acc = jnp.zeros_like(y1)                             # f32 accumulator (N*Hid, L)
    for k in range(K):
        d = k - pad
        if d == 0:
            tap = y1
        else:
            tap = pltpu.roll(y1, shift=(-d) % L, axis=1) * mask_ref[k]   # (1,L) bcast
        acc = acc + jnp.dot(w2_ref[k], tap.astype(cdt),
                            preferred_element_type=jnp.float32)
    y2 = jnp.tanh(acc + b2_ref[...])

    # --- projection: 1x1 conv + bias, residual add; full 8-sublane / 128-lane store -----
    y3 = jnp.dot(w3_ref[...], y2.astype(cdt),
                 preferred_element_type=jnp.float32)     # (N*C, L)
    o_ref[...] = (x + y3 + b3_ref[...]).astype(o_ref.dtype)


def inverted_residual_pallas(x_nchw, w1f, b1, w2f, b2, w3f, b3, *,
                             kernel_size=5, rows_per_block=None,
                             matmul_dtype=jnp.float32):
    """Fused InvertedResidual forward (stride=1, expand_ratio != 1, n_in == n_out).

    x_nchw: (N, C, H, W) float32.  BN-folded module weights:
      w1f: (Hid, C)        b1: (Hid,)
      w2f: (K, Hid, Hid)   b2: (Hid,)    (w2f[k] = weight matrix of conv tap k)
      w3f: (C, Hid)        b3: (C,)
    """
    N, C, H, W = x_nchw.shape
    Hid = w1f.shape[0]
    K = kernel_size
    pad = (K - 1) // 2
    HW = H * W

    # Lane chunking: default = whole image per step (tiny problems run as ONE grid step).
    # For large seismic H*W pick rows_per_block so the live block fits scoped VMEM
    # (~16 MiB v5e, ~32 MiB default on v6e/v7x; v7x physical VMEM is only 64 MiB) —
    # roughly L * 4B * (2*2*N*C + (K+2)*N*Hid) bytes per step — keep L a multiple of 128,
    # and keep >= 2 chunks so both v7x TensorCores get work and DMAs stay hidden.
    if rows_per_block is None:
        rows_per_block = H
    assert H % rows_per_block == 0, "lane chunks must cover whole H-rows"
    L = rows_per_block * W
    n_chunks = HW // L
    assert n_chunks == 1 or L % 128 == 0, "chunked lane tiles must be 128-aligned"

    NC, NH = N * C, N * Hid

    # Fold the whole batch into block-diagonal weights so x / out tiles are full
    # 8-sublane (N*C, L) vregs and one matmul per layer handles every image.
    eye = jnp.eye(N, dtype=jnp.float32)
    w1_big = jnp.kron(eye, w1f).astype(matmul_dtype)                               # (NH, NC)
    w2_big = jnp.stack([jnp.kron(eye, w2f[k]) for k in range(K)]).astype(matmul_dtype)  # (K, NH, NH)
    w3_big = jnp.kron(eye, w3f).astype(matmul_dtype)                               # (NC, NH)
    b1_big = jnp.tile(b1, N).reshape(NH, 1).astype(jnp.float32)
    b2_big = jnp.tile(b2, N).reshape(NH, 1).astype(jnp.float32)
    b3_big = jnp.tile(b3, N).reshape(NC, 1).astype(jnp.float32)

    # Precomputed W-boundary masks: depend only on the lane position inside a chunk
    # (chunks always start on a W-row boundary), so one constant (K, 1, L) input.
    wpos = jnp.arange(L, dtype=jnp.int32) % W
    mask = jnp.stack([((wpos + (k - pad) >= 0) & (wpos + (k - pad) < W))
                      .astype(jnp.float32) for k in range(K)]).reshape(K, 1, L)

    x_flat = x_nchw.reshape(NC, HW)          # free view: stays channels-first, lane-dense

    kern = functools.partial(inverted_residual_kernel, K=K)

    out_flat = pl.pallas_call(
        kern,
        out_shape=jax.ShapeDtypeStruct((NC, HW), x_nchw.dtype),
        grid=(n_chunks,),
        in_specs=[
            pl.BlockSpec((NC, L), lambda j: (0, j)),          # x  -> (N*C, L)
            pl.BlockSpec((NH, NC), lambda j: (0, 0)),         # w1 (block-diag)
            pl.BlockSpec((NH, 1), lambda j: (0, 0)),          # b1
            pl.BlockSpec((K, NH, NH), lambda j: (0, 0, 0)),   # w2 taps (block-diag)
            pl.BlockSpec((NH, 1), lambda j: (0, 0)),          # b2
            pl.BlockSpec((NC, NH), lambda j: (0, 0)),         # w3 (block-diag)
            pl.BlockSpec((NC, 1), lambda j: (0, 0)),          # b3
            pl.BlockSpec((K, 1, L), lambda j: (0, 0, 0)),     # boundary masks
        ],
        out_specs=pl.BlockSpec((NC, L), lambda j: (0, j)),
        compiler_params=pltpu.CompilerParams(
            dimension_semantics=("parallel",)),
    )(x_flat, w1_big, b1_big, w2_big, b2_big, w3_big, b3_big, mask)

    return out_flat.reshape(N, C, H, W)


def _fold_bn(gamma, beta, mean, var, eps=1e-5):
    scale = gamma / jnp.sqrt(var + eps)
    bias = beta - mean * scale
    return scale, bias


def _reference_forward(x, w1_t, s1, b1, w2_t, s2, b2, w3_t, s3, b3):
    """Pure-JAX reference mirroring the PyTorch NCHW conv semantics (eval-mode BN)."""
    dn = ('NCHW', 'OIHW', 'NCHW')
    K = w2_t.shape[-1]
    pad = (K - 1) // 2
    y = lax.conv_general_dilated(x, w1_t, (1, 1), [(0, 0), (0, 0)], dimension_numbers=dn)
    y = jnp.tanh(y * s1[None, :, None, None] + b1[None, :, None, None])
    y = lax.conv_general_dilated(y, w2_t, (1, 1), [(0, 0), (pad, pad)], dimension_numbers=dn)
    y = jnp.tanh(y * s2[None, :, None, None] + b2[None, :, None, None])
    y = lax.conv_general_dilated(y, w3_t, (1, 1), [(0, 0), (0, 0)], dimension_numbers=dn)
    y = y * s3[None, :, None, None] + b3[None, :, None, None]
    return x + y


if __name__ == "__main__":
    # Module hyper-params (consistent with the PyTorch forward).
    n_in, n_out, stride, expand_ratio = 4, 4, 1, 2
    hidden = int(round(n_in * expand_ratio))   # 8
    K = 5                                      # ConvBNReLU default kernel_size
    N, H, W = 2, 16, 16

    key = jax.random.PRNGKey(0)
    ks = jax.random.split(key, 8)

    x = jax.random.normal(ks[0], (N, n_in, H, W), jnp.float32)

    # PyTorch layouts: conv weights are OIHW.
    w1_t = jax.random.normal(ks[1], (hidden, n_in, 1, 1), jnp.float32) * 0.3
    w2_t = jax.random.normal(ks[2], (hidden, hidden, 1, K), jnp.float32) * 0.2
    w3_t = jax.random.normal(ks[3], (n_out, hidden, 1, 1), jnp.float32) * 0.3

    def bn_params(k, c):
        k1, k2, k3, k4 = jax.random.split(k, 4)
        gamma = 0.5 + jax.random.uniform(k1, (c,), jnp.float32)
        beta = jax.random.normal(k2, (c,), jnp.float32) * 0.1
        mean = jax.random.normal(k3, (c,), jnp.float32) * 0.1
        var = 0.5 + jax.random.uniform(k4, (c,), jnp.float32)
        return _fold_bn(gamma, beta, mean, var)

    s1, b1 = bn_params(ks[4], hidden)
    s2, b2 = bn_params(ks[5], hidden)
    s3, b3 = bn_params(ks[6], n_out)

    # Kernel-layout weights: BN scales folded in, channels-first matmul layouts.
    w1f = w1_t[:, :, 0, 0] * s1[:, None]                                 # (Hid, Cin)
    w2f = jnp.transpose(w2_t[:, :, 0, :], (2, 0, 1)) * s2[None, :, None]  # (K, O, I)
    w3f = w3_t[:, :, 0, 0] * s3[:, None]                                 # (Cout, Hid)

    ref = jax.block_until_ready(
        _reference_forward(x, w1_t, s1, b1, w2_t, s2, b2, w3_t, s3, b3))

    # f32 MXU operands (default): exact, validated tight.
    out = inverted_residual_pallas(x, w1f, b1, w2f, b2, w3f, b3, kernel_size=K)
    out = jax.block_until_ready(out)
    assert out.shape == x.shape and out.dtype == x.dtype
    err = jnp.max(jnp.abs(out - ref))
    assert jnp.allclose(out, ref, atol=1e-3, rtol=1e-3), f"f32 max abs err = {err}"

    # bf16 MXU operands (perf-review option): operands cast, f32 accumulate/elementwise.
    out_bf = jax.block_until_ready(
        inverted_residual_pallas(x, w1f, b1, w2f, b2, w3f, b3,
                                 kernel_size=K, matmul_dtype=jnp.bfloat16))
    err_bf = jnp.max(jnp.abs(out_bf - ref))
    assert jnp.allclose(out_bf, ref, atol=1e-1, rtol=1e-1), f"bf16 max abs err = {err_bf}"

    print("KERNEL_OK")
</pallas_src>

<mosaic_0001>
module attributes {stable_mosaic.version = 11 : i64} {
  func.func @inverted_residual_kernel(%arg0: i32, %arg1: memref<8x256xf32, #tpu.memory_space<vmem>>, %arg2: memref<16x8xf32, #tpu.memory_space<vmem>>, %arg3: memref<16x1xf32, #tpu.memory_space<vmem>>, %arg4: memref<5x16x16xf32, #tpu.memory_space<vmem>>, %arg5: memref<16x1xf32, #tpu.memory_space<vmem>>, %arg6: memref<8x16xf32, #tpu.memory_space<vmem>>, %arg7: memref<8x1xf32, #tpu.memory_space<vmem>>, %arg8: memref<5x1x256xf32, #tpu.memory_space<vmem>>, %arg9: memref<8x256xf32, #tpu.memory_space<vmem>>) attributes {dimension_semantics = [#tpu.dimension_semantics<parallel>], iteration_bounds = array<i64: 1>, scalar_prefetch = 0 : i64, scratch_operands = 0 : i64, tpu.core_type = #tpu.core_type<tc>, window_params = [{transform_indices = @transform_0, window_bounds = array<i64: 8, 256>}, {pipeline_mode = #tpu.pipeline_mode<synchronous>, transform_indices = @transform_1, window_bounds = array<i64: 16, 8>}, {pipeline_mode = #tpu.pipeline_mode<synchronous>, transform_indices = @transform_2, window_bounds = array<i64: 16, 1>}, {pipeline_mode = #tpu.pipeline_mode<synchronous>, transform_indices = @transform_3, window_bounds = array<i64: 5, 16, 16>}, {pipeline_mode = #tpu.pipeline_mode<synchronous>, transform_indices = @transform_4, window_bounds = array<i64: 16, 1>}, {pipeline_mode = #tpu.pipeline_mode<synchronous>, transform_indices = @transform_5, window_bounds = array<i64: 8, 16>}, {pipeline_mode = #tpu.pipeline_mode<synchronous>, transform_indices = @transform_6, window_bounds = array<i64: 8, 1>}, {pipeline_mode = #tpu.pipeline_mode<synchronous>, transform_indices = @transform_7, window_bounds = array<i64: 5, 1, 256>}, {transform_indices = @transform_8, window_bounds = array<i64: 8, 256>}]} {
    %c0 = arith.constant 0 : index
    %c0_0 = arith.constant 0 : index
    %0 = vector.load %arg1[%c0, %c0_0] : memref<8x256xf32, #tpu.memory_space<vmem>>, vector<8x256xf32>
    %c0_1 = arith.constant 0 : index
    %c0_2 = arith.constant 0 : index
    %1 = vector.load %arg2[%c0_1, %c0_2] : memref<16x8xf32, #tpu.memory_space<vmem>>, vector<16x8xf32>
    %cst = arith.constant dense<0.000000e+00> : vector<16x256xf32>
    %2 = tpu.matmul %1, %0, %cst {dimension_numbers = #tpu.dot_dimension_numbers<[1], [0], [0], [1], [0, 0, 1, 1], [], []>} : vector<16x8xf32>, vector<8x256xf32>, vector<16x256xf32> -> vector<16x256xf32>
    %c0_3 = arith.constant 0 : index
    %c0_4 = arith.constant 0 : index
    %3 = vector.load %arg3[%c0_3, %c0_4] : memref<16x1xf32, #tpu.memory_space<vmem>>, vector<16x1xf32>
    %4 = vector.broadcast %3 : vector<16x1xf32> to vector<16x256xf32>
    %5 = arith.addf %2, %4 : vector<16x256xf32>
    %6 = math.tanh %5 : vector<16x256xf32>
    %cst_5 = arith.constant 0.000000e+00 : f32
    %7 = vector.broadcast %cst_5 : f32 to vector<16x256xf32>
    %c2_i32 = arith.constant 2 : i32
    %8 = tpu.dynamic_rotate %6 by %c2_i32 dim 1 : vector<16x256xf32>, i32 -> vector<16x256xf32>
    %c0_6 = arith.constant 0 : index
    %c0_7 = arith.constant 0 : index
    %c0_8 = arith.constant 0 : index
    %9 = vector.load %arg8[%c0_6, %c0_7, %c0_8] : memref<5x1x256xf32, #tpu.memory_space<vmem>>, vector<1x1x256xf32>
    %10 = vector.shape_cast %9 : vector<1x1x256xf32> to vector<1x256xf32>
    %11 = vector.broadcast %10 : vector<1x256xf32> to vector<16x256xf32>
    %12 = arith.mulf %8, %11 : vector<16x256xf32>
    %c0_9 = arith.constant 0 : index
    %c0_10 = arith.constant 0 : index
    %c0_11 = arith.constant 0 : index
    %13 = vector.load %arg4[%c0_9, %c0_10, %c0_11] : memref<5x16x16xf32, #tpu.memory_space<vmem>>, vector<1x16x16xf32>
    %14 = vector.shape_cast %13 : vector<1x16x16xf32> to vector<16x16xf32>
    %cst_12 = arith.constant dense<0.000000e+00> : vector<16x256xf32>
    %15 = tpu.matmul %14, %12, %cst_12 {dimension_numbers = #tpu.dot_dimension_numbers<[1], [0], [0], [1], [0, 0, 1, 1], [], []>} : vector<16x16xf32>, vector<16x256xf32>, vector<16x256xf32> -> vector<16x256xf32>
    %16 = arith.addf %7, %15 : vector<16x256xf32>
    %c1_i32 = arith.constant 1 : i32
    %17 = tpu.dynamic_rotate %6 by %c1_i32 dim 1 : vector<16x256xf32>, i32 -> vector<16x256xf32>
    %c1 = arith.constant 1 : index
    %c0_13 = arith.constant 0 : index
    %c0_14 = arith.constant 0 : index
    %18 = vector.load %arg8[%c1, %c0_13, %c0_14] : memref<5x1x256xf32, #tpu.memory_space<vmem>>, vector<1x1x256xf32>
    %19 = vector.shape_cast %18 : vector<1x1x256xf32> to vector<1x256xf32>
    %20 = vector.broadcast %19 : vector<1x256xf32> to vector<16x256xf32>
    %21 = arith.mulf %17, %20 : vector<16x256xf32>
    %c1_15 = arith.constant 1 : index
    %c0_16 = arith.constant 0 : index
    %c0_17 = arith.constant 0 : index
    %22 = vector.load %arg4[%c1_15, %c0_16, %c0_17] : memref<5x16x16xf32, #tpu.memory_space<vmem>>, vector<1x16x16xf32>
    %23 = vector.shape_cast %22 : vector<1x16x16xf32> to vector<16x16xf32>
    %cst_18 = arith.constant dense<0.000000e+00> : vector<16x256xf32>
    %24 = tpu.matmul %23, %21, %cst_18 {dimension_numbers = #tpu.dot_dimension_numbers<[1], [0], [0], [1], [0, 0, 1, 1], [], []>} : vector<16x16xf32>, vector<16x256xf32>, vector<16x256xf32> -> vector<16x256xf32>
    %25 = arith.addf %16, %24 : vector<16x256xf32>
    %c2 = arith.constant 2 : index
    %c0_19 = arith.constant 0 : index
    %c0_20 = arith.constant 0 : index
    %26 = vector.load %arg4[%c2, %c0_19, %c0_20] : memref<5x16x16xf32, #tpu.memory_space<vmem>>, vector<1x16x16xf32>
    %27 = vector.shape_cast %26 : vector<1x16x16xf32> to vector<16x16xf32>
    %cst_21 = arith.constant dense<0.000000e+00> : vector<16x256xf32>
    %28 = tpu.matmul %27, %6, %cst_21 {dimension_numbers = #tpu.dot_dimension_numbers<[1], [0], [0], [1], [0, 0, 1, 1], [], []>} : vector<16x16xf32>, vector<16x256xf32>, vector<16x256xf32> -> vector<16x256xf32>
    %29 = arith.addf %25, %28 : vector<16x256xf32>
    %c255_i32 = arith.constant 255 : i32
    %30 = tpu.dynamic_rotate %6 by %c255_i32 dim 1 : vector<16x256xf32>, i32 -> vector<16x256xf32>
    %c3 = arith.constant 3 : index
    %c0_22 = arith.constant 0 : index
    %c0_23 = arith.constant 0 : index
    %31 = vector.load %arg8[%c3, %c0_22, %c0_23] : memref<5x1x256xf32, #tpu.memory_space<vmem>>, vector<1x1x256xf32>
    %32 = vector.shape_cast %31 : vector<1x1x256xf32> to vector<1x256xf32>
    %33 = vector.broadcast %32 : vector<1x256xf32> to vector<16x256xf32>
    %34 = arith.mulf %30, %33 : vector<16x256xf32>
    %c3_24 = arith.constant 3 : index
    %c0_25 = arith.constant 0 : index
    %c0_26 = arith.constant 0 : index
    %35 = vector.load %arg4[%c3_24, %c0_25, %c0_26] : memref<5x16x16xf32, #tpu.memory_space<vmem>>, vector<1x16x16xf32>
    %36 = vector.shape_cast %35 : vector<1x16x16xf32> to vector<16x16xf32>
    %cst_27 = arith.constant dense<0.000000e+00> : vector<16x256xf32>
    %37 = tpu.matmul %36, %34, %cst_27 {dimension_numbers = #tpu.dot_dimension_numbers<[1], [0], [0], [1], [0, 0, 1, 1], [], []>} : vector<16x16xf32>, vector<16x256xf32>, vector<16x256xf32> -> vector<16x256xf32>
    %38 = arith.addf %29, %37 : vector<16x256xf32>
    %c254_i32 = arith.constant 254 : i32
    %39 = tpu.dynamic_rotate %6 by %c254_i32 dim 1 : vector<16x256xf32>, i32 -> vector<16x256xf32>
    %c4 = arith.constant 4 : index
    %c0_28 = arith.constant 0 : index
    %c0_29 = arith.constant 0 : index
    %40 = vector.load %arg8[%c4, %c0_28, %c0_29] : memref<5x1x256xf32, #tpu.memory_space<vmem>>, vector<1x1x256xf32>
    %41 = vector.shape_cast %40 : vector<1x1x256xf32> to vector<1x256xf32>
    %42 = vector.broadcast %41 : vector<1x256xf32> to vector<16x256xf32>
    %43 = arith.mulf %39, %42 : vector<16x256xf32>
    %c4_30 = arith.constant 4 : index
    %c0_31 = arith.constant 0 : index
    %c0_32 = arith.constant 0 : index
    %44 = vector.load %arg4[%c4_30, %c0_31, %c0_32] : memref<5x16x16xf32, #tpu.memory_space<vmem>>, vector<1x16x16xf32>
    %45 = vector.shape_cast %44 : vector<1x16x16xf32> to vector<16x16xf32>
    %cst_33 = arith.constant dense<0.000000e+00> : vector<16x256xf32>
    %46 = tpu.matmul %45, %43, %cst_33 {dimension_numbers = #tpu.dot_dimension_numbers<[1], [0], [0], [1], [0, 0, 1, 1], [], []>} : vector<16x16xf32>, vector<16x256xf32>, vector<16x256xf32> -> vector<16x256xf32>
    %47 = arith.addf %38, %46 : vector<16x256xf32>
    %c0_34 = arith.constant 0 : index
    %c0_35 = arith.constant 0 : index
    %48 = vector.load %arg5[%c0_34, %c0_35] : memref<16x1xf32, #tpu.memory_space<vmem>>, vector<16x1xf32>
    %49 = vector.broadcast %48 : vector<16x1xf32> to vector<16x256xf32>
    %50 = arith.addf %47, %49 : vector<16x256xf32>
    %51 = math.tanh %50 : vector<16x256xf32>
    %c0_36 = arith.constant 0 : index
    %c0_37 = arith.constant 0 : index
    %52 = vector.load %arg6[%c0_36, %c0_37] : memref<8x16xf32, #tpu.memory_space<vmem>>, vector<8x16xf32>
    %cst_38 = arith.constant dense<0.000000e+00> : vector<8x256xf32>
    %53 = tpu.matmul %52, %51, %cst_38 {dimension_numbers = #tpu.dot_dimension_numbers<[1], [0], [0], [1], [0, 0, 1, 1], [], []>} : vector<8x16xf32>, vector<16x256xf32>, vector<8x256xf32> -> vector<8x256xf32>
    %54 = arith.addf %0, %53 : vector<8x256xf32>
    %c0_39 = arith.constant 0 : index
    %c0_40 = arith.constant 0 : index
    %55 = vector.load %arg7[%c0_39, %c0_40] : memref<8x1xf32, #tpu.memory_space<vmem>>, vector<8x1xf32>
    %56 = vector.broadcast %55 : vector<8x1xf32> to vector<8x256xf32>
    %57 = arith.addf %54, %56 : vector<8x256xf32>
    %c0_41 = arith.constant 0 : index
    %c0_42 = arith.constant 0 : index
    %58 = vector.load %arg9[%c0_41, %c0_42] : memref<8x256xf32, #tpu.memory_space<vmem>>, vector<8x256xf32>
    tpu.vector_store %arg9[%c0_41, %c0_42], %57 {strides = array<i32>} : memref<8x256xf32, #tpu.memory_space<vmem>>, vector<8x256xf32>,
    return
  }
  func.func @transform_0(%arg0: i32) -> (i32, i32) {
    %c0_i32 = arith.constant 0 : i32
    %c0_i32_0 = arith.constant 0 : i32
    return %c0_i32, %arg0 : i32, i32
  }
  func.func @transform_1(%arg0: i32) -> (i32, i32) {
    %c0_i32 = arith.constant 0 : i32
    %c0_i32_0 = arith.constant 0 : i32
    %c0_i32_1 = arith.constant 0 : i32
    return %c0_i32, %c0_i32_0 : i32, i32
  }
  func.func @transform_2(%arg0: i32) -> (i32, i32) {
    %c0_i32 = arith.constant 0 : i32
    %c0_i32_0 = arith.constant 0 : i32
    %c0_i32_1 = arith.constant 0 : i32
    return %c0_i32, %c0_i32_0 : i32, i32
  }
  func.func @transform_3(%arg0: i32) -> (i32, i32, i32) {
    %c0_i32 = arith.constant 0 : i32
    %c0_i32_0 = arith.constant 0 : i32
    %c0_i32_1 = arith.constant 0 : i32
    %c0_i32_2 = arith.constant 0 : i32
    return %c0_i32, %c0_i32_0, %c0_i32_1 : i32, i32, i32
  }
  func.func @transform_4(%arg0: i32) -> (i32, i32) {
    %c0_i32 = arith.constant 0 : i32
    %c0_i32_0 = arith.constant 0 : i32
    %c0_i32_1 = arith.constant 0 : i32
    return %c0_i32, %c0_i32_0 : i32, i32
  }
  func.func @transform_5(%arg0: i32) -> (i32, i32) {
    %c0_i32 = arith.constant 0 : i32
    %c0_i32_0 = arith.constant 0 : i32
    %c0_i32_1 = arith.constant 0 : i32
    return %c0_i32, %c0_i32_0 : i32, i32
  }
  func.func @transform_6(%arg0: i32) -> (i32, i32) {
    %c0_i32 = arith.constant 0 : i32
    %c0_i32_0 = arith.constant 0 : i32
    %c0_i32_1 = arith.constant 0 : i32
    return %c0_i32, %c0_i32_0 : i32, i32
  }
  func.func @transform_7(%arg0: i32) -> (i32, i32, i32) {
    %c0_i32 = arith.constant 0 : i32
    %c0_i32_0 = arith.constant 0 : i32
    %c0_i32_1 = arith.constant 0 : i32
    %c0_i32_2 = arith.constant 0 : i32
    return %c0_i32, %c0_i32_0, %c0_i32_1 : i32, i32, i32
  }
  func.func @transform_8(%arg0: i32) -> (i32, i32) {
    %c0_i32 = arith.constant 0 : i32
    %c0_i32_0 = arith.constant 0 : i32
    return %c0_i32, %arg0 : i32, i32
  }
}

</mosaic_0001>

<llo_original>
// kernel: tpu_custom_call.1
$region0: #{tpu_custom_call.1}
  #allocation0 [shape = 'u32[]', space=smem, size = 0x4, offset = 0x4, fixed_abs, tag = 'smem constant byte address 0x4 - core index']
  #allocation1 [shape = 'u32[144,128]{1,0:T(1,128)}', space=vmem, size = 0x12000, scoped, tag = 'internal scratch']
  %s0 = inlined_call_operand.vmem [shape: f32[8,256], index: 0, kind: input, shape index: {}]
  %s1 = inlined_call_operand.vmem [shape: f32[16,8], index: 1, kind: input, shape index: {}]
  %s2 = inlined_call_operand.vmem [shape: f32[16,1], index: 2, kind: input, shape index: {}]
  %s3 = inlined_call_operand.hbm [shape: f32[5,16,16], index: 3, kind: input, shape index: {}]
  %s4 = inlined_call_operand.vmem [shape: f32[16,1], index: 4, kind: input, shape index: {}]
  %s5 = inlined_call_operand.vmem [shape: f32[8,16], index: 5, kind: input, shape index: {}]
  %s6 = inlined_call_operand.vmem [shape: f32[8,1], index: 6, kind: input, shape index: {}]
  %s7 = inlined_call_operand.vmem [shape: f32[5,1,256], index: 7, kind: input, shape index: {}]
  %s8 = inlined_call_operand.hbm [shape: f32[8,256], index: 8, kind: output, shape index: {}]
  %s9 = sld [smem:[#allocation0]]
  $region46: #{tpu_custom_call.1} parent=0
    _
  %s11 = ssub.s32 1, %s9
  %s12 = scalar_select 0, %s11, %s9
  $region1: #{tpu_custom_call.1} parent=0
    #allocation2 [shape = 'u8[40960]{0}', space=vmem, size = 0xa000, scoped, tag = 'input window, operand 3, single buffered']
    #allocation3 [shape = 's32[1]{0}', space=sflag, size = 0x4, scoped, tag = 'scoped memory for tpu_custom_call.1']
    #allocation4 [shape = 's32[1]{0}', space=sflag, size = 0x4, scoped, tag = 'scoped memory for tpu_custom_call.1']
    #allocation5 [shape = 'u8[8192]{0}', space=vmem, size = 0x2000, scoped, tag = 'output window, operand 0, single buffered']
    %13 = vsyncpa [#allocation3], 0
    %14 = vsyncpa [#allocation4], 0
    // Predicated region
    $region2: #{tpu_custom_call.1} parent=1 // pred_check
      _
    $region3: #{tpu_custom_call.1} parent=1 // pred_check_branch
      %16 = sbr.rel (0) target = $region5
    $region4: #{tpu_custom_call.1} parent=1 // pred_region
      _
    $region5: #{tpu_custom_call.1} parent=1 // pred_fallthru
      _
    // Predicated region
    $region6: #{tpu_custom_call.1} parent=1 // pred_check
      _
    $region7: #{tpu_custom_call.1} parent=1 // pred_check_branch
      %18 = sbr.rel (0) target = $region9
    $region8: #{tpu_custom_call.1} parent=1 // pred_region
      _
    $region9: #{tpu_custom_call.1} parent=1 // pred_fallthru
      _
    // Predicated region
    $region10: #{tpu_custom_call.1} parent=1 // pred_check
      _
    $region11: #{tpu_custom_call.1} parent=1 // pred_check_branch
      %20 = sbr.rel (0) target = $region13
    $region12: #{tpu_custom_call.1} parent=1 // pred_region
      _
    $region13: #{tpu_custom_call.1} parent=1 // pred_fallthru
      _
    // Predicated region
    $region14: #{tpu_custom_call.1} parent=1 // pred_check
      _
    $region15: #{tpu_custom_call.1} parent=1 // pred_check_branch
      %22 = sbr.rel (0) target = $region17
    $region16: #{tpu_custom_call.1} parent=1 // pred_region
      %s24 = ssub.s32 1280, 1280
      %25 = vsyncadd [#allocation3], %s24
      %s26 = sshll.u32 [#allocation2], 4
      %s27 = int_to_ptr.vmem [resolvable:$true] %s26
      %32 = dma.hbm_to_vmem [thread:$0]  %s3, 1280, %s27, [#allocation3], 128, 128, 8
    $region17: #{tpu_custom_call.1} parent=1 // pred_fallthru
      _
    // Predicated region
    $region18: #{tpu_custom_call.1} parent=1 // pred_check
      _
    $region19: #{tpu_custom_call.1} parent=1 // pred_check_branch
      %34 = sbr.rel (0) target = $region21
    $region20: #{tpu_custom_call.1} parent=1 // pred_region
      _
    $region21: #{tpu_custom_call.1} parent=1 // pred_fallthru
      _
    // Predicated region
    $region22: #{tpu_custom_call.1} parent=1 // pred_check
      _
    $region23: #{tpu_custom_call.1} parent=1 // pred_check_branch
      %36 = sbr.rel (0) target = $region25
    $region24: #{tpu_custom_call.1} parent=1 // pred_region
      _
    $region25: #{tpu_custom_call.1} parent=1 // pred_fallthru
      _
    // Predicated region
    $region26: #{tpu_custom_call.1} parent=1 // pred_check
      _
    $region27: #{tpu_custom_call.1} parent=1 // pred_check_branch
      %38 = sbr.rel (0) target = $region29
    $region28: #{tpu_custom_call.1} parent=1 // pred_region
      _
    $region29: #{tpu_custom_call.1} parent=1 // pred_fallthru
      _
    // Predicated region
    $region30: #{tpu_custom_call.1} parent=1 // pred_check
      _
    $region31: #{tpu_custom_call.1} parent=1 // pred_check_branch
      %40 = sbr.rel (0) target = $region33
    $region32: #{tpu_custom_call.1} parent=1 // pred_region
      _
    $region33: #{tpu_custom_call.1} parent=1 // pred_fallthru
      _
    // Predicated region
    $region34: #{tpu_custom_call.1} parent=1 // pred_check
      _
    $region35: #{tpu_custom_call.1} parent=1 // pred_check_branch
      %42 = sbr.rel (0) target = $region37
    $region36: #{tpu_custom_call.1} parent=1 // pred_region
      %43 = dma.done [#allocation3], 1280
    $region37: #{tpu_custom_call.1} parent=1 // pred_fallthru
      _
    %v44 = vld [vmem:[%s0] sm:$0xff]
    %v45 = vld [vmem:[%s0 + $0x8] sm:$0xff]
    %v46 = vld [vmem:[%s1] sm:$0xff]
    %v47 = vld [vmem:[%s1 + $0x8] sm:$0xff]
    %v48 = vld [vmem:[%s2] sm:$0xff]
    %v49 = vld [vmem:[%s2 + $0x8] sm:$0xff]
    %51 = vset.pattern.permute.xlu0 0
    %52 = vperm.xlu0 %51, %v48
    %v53 = vpop.permute.xlu0 %52
    %56 = vset.pattern.permute.xlu0 0
    %57 = vperm.xlu0 %56, %v49
    %v58 = vpop.permute.xlu0 %57
    %vm60 = vcmask 64512
    %v62 = vsel %vm60, %v46, 0
    %v65 = vsel %vm60, %v47, 0
    %67 = vmatprep.subr.mxu0 %v45
    %68 = vmatpush1.msra.mxu0 %v44
    %69 = vmatprep.subr.mxu0 0.0
    %70 = vmatpush1.msra.mxu0 0.0
    %71 = vmatprep.subr.mxu0 0.0
    %72 = vmatpush1.msra.mxu0 0.0
    %73 = vmatprep.subr.mxu0 0.0
    %74 = vmatpush1.msra.mxu0 0.0
    %75 = vmatprep.subr.mxu0 0.0
    %76 = vmatpush1.msra.mxu0 0.0
    %77 = vmatprep.subr.mxu0 0.0
    %78 = vmatpush1.msra.mxu0 0.0
    %79 = vmatprep.subr.mxu0 0.0
    %80 = vmatpush1.msra.mxu0 0.0
    %81 = vmatprep.subr.mxu0 0.0
    %82 = vmatpush1.msra.mxu0 0.0
    %83 = vmatprep.subr.mxu0 0.0
    %84 = vmatpush1.msra.mxu0 0.0
    %85 = vmatprep.subr.mxu0 0.0
    %86 = vmatpush1.msra.mxu0 0.0
    %87 = vmatprep.subr.mxu0 0.0
    %88 = vmatpush1.msra.mxu0 0.0
    %89 = vmatprep.subr.mxu0 0.0
    %90 = vmatpush1.msra.mxu0 0.0
    %91 = vmatprep.subr.mxu0 0.0
    %92 = vmatpush1.msra.mxu0 0.0
    %93 = vmatprep.subr.mxu0 0.0
    %94 = vmatpush1.msra.mxu0 0.0
    %95 = vmatprep.subr.mxu0 0.0
    %96 = vmatpush1.msra.mxu0 0.0
    %97 = vmatprep.subr.mxu0 0.0
    %98 = vmatpush1.msra.mxu0 0.0
    %99 = vmatprep.subr.mxu0 0.0
    %100 = vmatpush1.msra.mxu0 0.0
    %101 = vmatprep.subr.mxu0 0.0
    %102 = vmatpush1.msra.mxu0 0.0
    %103 = vmatprep.subr.mxu0 0.0
    %104 = vmatpush1.msra.mxu0 0.0
    %105 = vmatprep.subr.mxu0 0.0
    %106 = vmatpush1.msra.mxu0 0.0
    %107 = vmatprep.subr.mxu0 0.0
    %108 = vmatpush1.msra.mxu0 0.0
    %109 = vmatprep.subr.mxu0 0.0
    %110 = vmatpush1.msra.mxu0 0.0
    %111 = vmatprep.subr.mxu0 0.0
    %112 = vmatpush1.msra.mxu0 0.0
    %113 = vmatprep.subr.mxu0 0.0
    %114 = vmatpush1.msra.mxu0 0.0
    %115 = vmatprep.subr.mxu0 0.0
    %116 = vmatpush1.msra.mxu0 0.0
    %117 = vmatprep.subr.mxu0 0.0
    %118 = vmatpush1.msra.mxu0 0.0
    %119 = vmatprep.subr.mxu0 0.0
    %120 = vmatpush1.msra.mxu0 0.0
    %121 = vmatprep.subr.mxu0 0.0
    %122 = vmatpush1.msra.mxu0 0.0
    %123 = vmatprep.subr.mxu0 0.0
    %124 = vmatpush1.msra.mxu0 0.0
    %125 = vmatprep.subr.mxu0 0.0
    %126 = vmatpush1.msra.mxu0 0.0
    %127 = vmatprep.subr.mxu0 0.0
    %128 = vmatpush1.msra.mxu0 0.0
    %129 = vmatprep.subr.mxu0 0.0
    %130 = vmatpush1.msra.mxu0 0.0
    %131 = vmatprep.mubr.f32.mxu0 0.0
    %132 = vmatmul.mubr.f32.gmra.mrb[0].mxu0 %v62
    %v133 = vpop.f32.mrb[0].mxu0
    %v134 = vadd.f32 %v53, %v133
    %v135 = vpop.f32.mrb[0].mxu0
    %v136 = vadd.f32 %v53, %v135
    %137 = vmatprep.mubr.f32.mxu0 0.0
    %138 = vmatmul.mubr.f32.gmra.mrb[0].mxu0 %v65
    %v139 = vpop.f32.mrb[0].mxu0
    %v140 = vadd.f32 %v58, %v139
    %v141 = vpop.f32.mrb[0].mxu0
    %v142 = vadd.f32 %v58, %v141
    %143 = vdwg.mxu0
    %v144 = vtanh.pop %v134
    %v145 = vtanh.pop %v136
    %v146 = vtanh.pop %v140
    %v147 = vtanh.pop %v142
    %148 = vrot.lane.b32.xlu0 %v144, 2
    %v149 = vpop.permute.xlu0 %148
    %150 = vrot.lane.b32.xlu0 %v146, 2
    %v151 = vpop.permute.xlu0 %150
    %152 = vrot.lane.b32.xlu0 %v145, 2
    %v153 = vpop.permute.xlu0 %152
    %154 = vrot.lane.b32.xlu0 %v147, 2
    %v155 = vpop.permute.xlu0 %154
    %v156 = vlaneseq
    %v157 = vand.u32 %v156, 127
    %vm158 = vcmp.lt.s32.totalorder %v157, 2
    %v159 = vsel %vm158, %v149, %v153
    %v160 = vsel %vm158, %v151, %v155
    %v161 = vsel %vm158, %v153, %v149
    %v162 = vsel %vm158, %v155, %v151
    %v163 = vld [vmem:[%s7] sm:$0x3]
    %v165 = vlaneseq
    %v166 = vshrl.u32 %v165, 7
    %v167 = vsub.s32 0, %v166
    %v168 = vrot.slane %v163, %v167
    %v169 = vlaneseq
    %v170 = vshrl.u32 %v169, 7
    %v171 = vsub.s32 1, %v170
    %v172 = vrot.slane %v163, %v171
    %v175 = vmul.f32 %v161, %v168
    %v176 = vmul.f32 %v159, %v172
    %v177 = vmul.f32 %v162, %v168
    %v178 = vmul.f32 %v160, %v172
    %v179 = vld [vmem:[#allocation2] sm:$0xff]
    %v180 = vld [vmem:[#allocation2 + $0x8] sm:$0xff]
    %181 = vrot.lane.b32.xlu0 %v144, 1
    %v182 = vpop.permute.xlu0 %181
    %183 = vrot.lane.b32.xlu0 %v146, 1
    %v184 = vpop.permute.xlu0 %183
    %185 = vrot.lane.b32.xlu0 %v145, 1
    %v186 = vpop.permute.xlu0 %185
    %187 = vrot.lane.b32.xlu0 %v147, 1
    %v188 = vpop.permute.xlu0 %187
    %vm189 = vcmp.lt.s32.totalorder %v157, 1
    %v190 = vsel %vm189, %v182, %v186
    %v191 = vsel %vm189, %v184, %v188
    %v192 = vsel %vm189, %v186, %v182
    %v193 = vsel %vm189, %v188, %v184
    %s194 = scalar_lea.vmem %s7, 2
    %v195 = vld [vmem:[%s194] sm:$0x3]
    %v197 = vlaneseq
    %v198 = vshrl.u32 %v197, 7
    %v199 = vsub.s32 0, %v198
    %v200 = vrot.slane %v195, %v199
    %v201 = vlaneseq
    %v202 = vshrl.u32 %v201, 7
    %v203 = vsub.s32 1, %v202
    %v204 = vrot.slane %v195, %v203
    %v207 = vmul.f32 %v192, %v200
    %v208 = vmul.f32 %v190, %v204
    %v209 = vmul.f32 %v193, %v200
    %v210 = vmul.f32 %v191, %v204
    %s211 = scalar_lea.vmem [#allocation2], 16
    %v212 = vld [vmem:[%s211] sm:$0xff]
    %v213 = vld [vmem:[%s211 + $0x8] sm:$0xff]
    %vm214 = vcmask 130048
    %v216 = vsel %vm214, %v212, 0
    %v219 = vsel %vm214, %v213, 0
    %221 = vmatprep.subr.mxu0 %v208
    %222 = vmatpush1.msra.mxu0 %v207
    %223 = vmatprep.subr.mxu0 %v210
    %224 = vmatpush1.msra.mxu0 %v209
    %225 = vmatprep.subr.mxu0 0.0
    %226 = vmatpush1.msra.mxu0 0.0
    %227 = vmatprep.subr.mxu0 0.0
    %228 = vmatpush1.msra.mxu0 0.0
    %229 = vmatprep.subr.mxu0 0.0
    %230 = vmatpush1.msra.mxu0 0.0
    %231 = vmatprep.subr.mxu0 0.0
    %232 = vmatpush1.msra.mxu0 0.0
    %233 = vmatprep.subr.mxu0 0.0
    %234 = vmatpush1.msra.mxu0 0.0
    %235 = vmatprep.subr.mxu0 0.0
    %236 = vmatpush1.msra.mxu0 0.0
    %237 = vmatprep.subr.mxu0 0.0
    %238 = vmatpush1.msra.mxu0 0.0
    %239 = vmatprep.subr.mxu0 0.0
    %240 = vmatpush1.msra.mxu0 0.0
    %241 = vmatprep.subr.mxu0 0.0
    %242 = vmatpush1.msra.mxu0 0.0
    %243 = vmatprep.subr.mxu0 0.0
    %244 = vmatpush1.msra.mxu0 0.0
    %245 = vmatprep.subr.mxu0 0.0
    %246 = vmatpush1.msra.mxu0 0.0
    %247 = vmatprep.subr.mxu0 0.0
    %248 = vmatpush1.msra.mxu0 0.0
    %249 = vmatprep.subr.mxu0 0.0
    %250 = vmatpush1.msra.mxu0 0.0
    %251 = vmatprep.subr.mxu0 0.0
    %252 = vmatpush1.msra.mxu0 0.0
    %253 = vmatprep.subr.mxu0 0.0
    %254 = vmatpush1.msra.mxu0 0.0
    %255 = vmatprep.subr.mxu0 0.0
    %256 = vmatpush1.msra.mxu0 0.0
    %257 = vmatprep.subr.mxu0 0.0
    %258 = vmatpush1.msra.mxu0 0.0
    %259 = vmatprep.subr.mxu0 0.0
    %260 = vmatpush1.msra.mxu0 0.0
    %261 = vmatprep.subr.mxu0 0.0
    %262 = vmatpush1.msra.mxu0 0.0
    %263 = vmatprep.subr.mxu0 0.0
    %264 = vmatpush1.msra.mxu0 0.0
    %265 = vmatprep.subr.mxu0 0.0
    %266 = vmatpush1.msra.mxu0 0.0
    %267 = vmatprep.subr.mxu0 0.0
    %268 = vmatpush1.msra.mxu0 0.0
    %269 = vmatprep.subr.mxu0 0.0
    %270 = vmatpush1.msra.mxu0 0.0
    %271 = vmatprep.subr.mxu0 0.0
    %272 = vmatpush1.msra.mxu0 0.0
    %273 = vmatprep.subr.mxu0 0.0
    %274 = vmatpush1.msra.mxu0 0.0
    %275 = vmatprep.subr.mxu0 0.0
    %276 = vmatpush1.msra.mxu0 0.0
    %277 = vmatprep.subr.mxu0 0.0
    %278 = vmatpush1.msra.mxu0 0.0
    %279 = vmatprep.subr.mxu0 0.0
    %280 = vmatpush1.msra.mxu0 0.0
    %281 = vmatprep.subr.mxu0 0.0
    %282 = vmatpush1.msra.mxu0 0.0
    %283 = vmatprep.subr.mxu0 0.0
    %284 = vmatpush1.msra.mxu0 0.0
    %285 = vmatprep.mubr.f32.mxu0 0.0
    %286 = vmatmul.mubr.f32.gmra.mrb[0].mxu0 %v216
    %v287 = vpop.f32.mrb[0].mxu0
    %v288 = vadd.f32 0.0, %v287
    %v289 = vpop.f32.mrb[0].mxu0
    %v290 = vadd.f32 0.0, %v289
    %291 = vmatprep.mubr.f32.mxu0 0.0
    %292 = vmatmul.mubr.f32.gmra.mrb[0].mxu0 %v219
    %v293 = vpop.f32.mrb[0].mxu0
    %v294 = vadd.f32 0.0, %v293
    %v295 = vpop.f32.mrb[0].mxu0
    %v296 = vadd.f32 0.0, %v295
    %297 = vdwg.mxu0
    %v299 = vsel %vm214, %v179, 0
    %v302 = vsel %vm214, %v180, 0
    %304 = vmatprep.subr.mxu0 %v176
    %305 = vmatpush1.msra.mxu0 %v175
    %306 = vmatprep.subr.mxu0 %v178
    %307 = vmatpush1.msra.mxu0 %v177
    %308 = vmatprep.subr.mxu0 0.0
    %309 = vmatpush1.msra.mxu0 0.0
    %310 = vmatprep.subr.mxu0 0.0
    %311 = vmatpush1.msra.mxu0 0.0
    %312 = vmatprep.subr.mxu0 0.0
    %313 = vmatpush1.msra.mxu0 0.0
    %314 = vmatprep.subr.mxu0 0.0
    %315 = vmatpush1.msra.mxu0 0.0
    %316 = vmatprep.subr.mxu0 0.0
    %317 = vmatpush1.msra.mxu0 0.0
    %318 = vmatprep.subr.mxu0 0.0
    %319 = vmatpush1.msra.mxu0 0.0
    %320 = vmatprep.subr.mxu0 0.0
    %321 = vmatpush1.msra.mxu0 0.0
    %322 = vmatprep.subr.mxu0 0.0
    %323 = vmatpush1.msra.mxu0 0.0
    %324 = vmatprep.subr.mxu0 0.0
    %325 = vmatpush1.msra.mxu0 0.0
    %326 = vmatprep.subr.mxu0 0.0
    %327 = vmatpush1.msra.mxu0 0.0
    %328 = vmatprep.subr.mxu0 0.0
    %329 = vmatpush1.msra.mxu0 0.0
    %330 = vmatprep.subr.mxu0 0.0
    %331 = vmatpush1.msra.mxu0 0.0
    %332 = vmatprep.subr.mxu0 0.0
    %333 = vmatpush1.msra.mxu0 0.0
    %334 = vmatprep.subr.mxu0 0.0
    %335 = vmatpush1.msra.mxu0 0.0
    %336 = vmatprep.subr.mxu0 0.0
    %337 = vmatpush1.msra.mxu0 0.0
    %338 = vmatprep.subr.mxu0 0.0
    %339 = vmatpush1.msra.mxu0 0.0
    %340 = vmatprep.subr.mxu0 0.0
    %341 = vmatpush1.msra.mxu0 0.0
    %342 = vmatprep.subr.mxu0 0.0
    %343 = vmatpush1.msra.mxu0 0.0
    %344 = vmatprep.subr.mxu0 0.0
    %345 = vmatpush1.msra.mxu0 0.0
    %346 = vmatprep.subr.mxu0 0.0
    %347 = vmatpush1.msra.mxu0 0.0
    %348 = vmatprep.subr.mxu0 0.0
    %349 = vmatpush1.msra.mxu0 0.0
    %350 = vmatprep.subr.mxu0 0.0
    %351 = vmatpush1.msra.mxu0 0.0
    %352 = vmatprep.subr.mxu0 0.0
    %353 = vmatpush1.msra.mxu0 0.0
    %354 = vmatprep.subr.mxu0 0.0
    %355 = vmatpush1.msra.mxu0 0.0
    %356 = vmatprep.subr.mxu0 0.0
    %357 = vmatpush1.msra.mxu0 0.0
    %358 = vmatprep.subr.mxu0 0.0
    %359 = vmatpush1.msra.mxu0 0.0
    %360 = vmatprep.subr.mxu0 0.0
    %361 = vmatpush1.msra.mxu0 0.0
    %362 = vmatprep.subr.mxu0 0.0
    %363 = vmatpush1.msra.mxu0 0.0
    %364 = vmatprep.subr.mxu0 0.0
    %365 = vmatpush1.msra.mxu0 0.0
    %366 = vmatprep.subr.mxu0 0.0
    %367 = vmatpush1.msra.mxu0 0.0
    %368 = vmatprep.mubr.f32.mxu0 0.0
    %369 = vmatmul.mubr.f32.gmra.mrb[0].mxu0 %v299
    %v370 = vpop.f32.mrb[0].mxu0
    %v371 = vadd.f32 %v288, %v370
    %v372 = vpop.f32.mrb[0].mxu0
    %v373 = vadd.f32 %v290, %v372
    %374 = vmatprep.mubr.f32.mxu0 0.0
    %375 = vmatmul.mubr.f32.gmra.mrb[0].mxu0 %v302
    %v376 = vpop.f32.mrb[0].mxu0
    %v377 = vadd.f32 %v294, %v376
    %v378 = vpop.f32.mrb[0].mxu0
    %v379 = vadd.f32 %v296, %v378
    %380 = vdwg.mxu0
    %s381 = scalar_lea.vmem [#allocation2], 32
    %v382 = vld [vmem:[%s381] sm:$0xff]
    %v383 = vld [vmem:[%s381 + $0x8] sm:$0xff]
    %v385 = vsel %vm214, %v382, 0
    %v388 = vsel %vm214, %v383, 0
    %390 = vmatprep.subr.mxu0 %v145
    %391 = vmatpush1.msra.mxu0 %v144
    %392 = vmatprep.subr.mxu0 %v147
    %393 = vmatpush1.msra.mxu0 %v146
    %394 = vmatprep.subr.mxu0 0.0
    %395 = vmatpush1.msra.mxu0 0.0
    %396 = vmatprep.subr.mxu0 0.0
    %397 = vmatpush1.msra.mxu0 0.0
    %398 = vmatprep.subr.mxu0 0.0
    %399 = vmatpush1.msra.mxu0 0.0
    %400 = vmatprep.subr.mxu0 0.0
    %401 = vmatpush1.msra.mxu0 0.0
    %402 = vmatprep.subr.mxu0 0.0
    %403 = vmatpush1.msra.mxu0 0.0
    %404 = vmatprep.subr.mxu0 0.0
    %405 = vmatpush1.msra.mxu0 0.0
    %406 = vmatprep.subr.mxu0 0.0
    %407 = vmatpush1.msra.mxu0 0.0
    %408 = vmatprep.subr.mxu0 0.0
    %409 = vmatpush1.msra.mxu0 0.0
    %410 = vmatprep.subr.mxu0 0.0
    %411 = vmatpush1.msra.mxu0 0.0
    %412 = vmatprep.subr.mxu0 0.0
    %413 = vmatpush1.msra.mxu0 0.0
    %414 = vmatprep.subr.mxu0 0.0
    %415 = vmatpush1.msra.mxu0 0.0
    %416 = vmatprep.subr.mxu0 0.0
    %417 = vmatpush1.msra.mxu0 0.0
    %418 = vmatprep.subr.mxu0 0.0
    %419 = vmatpush1.msra.mxu0 0.0
    %420 = vmatprep.subr.mxu0 0.0
    %421 = vmatpush1.msra.mxu0 0.0
    %422 = vmatprep.subr.mxu0 0.0
    %423 = vmatpush1.msra.mxu0 0.0
    %424 = vmatprep.subr.mxu0 0.0
    %425 = vmatpush1.msra.mxu0 0.0
    %426 = vmatprep.subr.mxu0 0.0
    %427 = vmatpush1.msra.mxu0 0.0
    %428 = vmatprep.subr.mxu0 0.0
    %429 = vmatpush1.msra.mxu0 0.0
    %430 = vmatprep.subr.mxu0 0.0
    %431 = vmatpush1.msra.mxu0 0.0
    %432 = vmatprep.subr.mxu0 0.0
    %433 = vmatpush1.msra.mxu0 0.0
    %434 = vmatprep.subr.mxu0 0.0
    %435 = vmatpush1.msra.mxu0 0.0
    %436 = vmatprep.subr.mxu0 0.0
    %437 = vmatpush1.msra.mxu0 0.0
    %438 = vmatprep.subr.mxu0 0.0
    %439 = vmatpush1.msra.mxu0 0.0
    %440 = vmatprep.subr.mxu0 0.0
    %441 = vmatpush1.msra.mxu0 0.0
    %442 = vmatprep.subr.mxu0 0.0
    %443 = vmatpush1.msra.mxu0 0.0
    %444 = vmatprep.subr.mxu0 0.0
    %445 = vmatpush1.msra.mxu0 0.0
    %446 = vmatprep.subr.mxu0 0.0
    %447 = vmatpush1.msra.mxu0 0.0
    %448 = vmatprep.subr.mxu0 0.0
    %449 = vmatpush1.msra.mxu0 0.0
    %450 = vmatprep.subr.mxu0 0.0
    %451 = vmatpush1.msra.mxu0 0.0
    %452 = vmatprep.subr.mxu0 0.0
    %453 = vmatpush1.msra.mxu0 0.0
    %454 = vmatprep.mubr.f32.mxu0 0.0
    %455 = vmatmul.mubr.f32.gmra.mrb[0].mxu0 %v385
    %v456 = vpop.f32.mrb[0].mxu0
    %v457 = vadd.f32 0.0, %v456
    %v458 = vpop.f32.mrb[0].mxu0
    %v459 = vadd.f32 0.0, %v458
    %460 = vmatprep.mubr.f32.mxu0 0.0
    %461 = vmatmul.mubr.f32.gmra.mrb[0].mxu0 %v388
    %v462 = vpop.f32.mrb[0].mxu0
    %v463 = vadd.f32 0.0, %v462
    %v464 = vpop.f32.mrb[0].mxu0
    %v465 = vadd.f32 0.0, %v464
    %466 = vdwg.mxu0
    %v467 = vadd.f32 %v371, %v457
    %v468 = vadd.f32 %v373, %v459
    %v469 = vadd.f32 %v377, %v463
    %v470 = vadd.f32 %v379, %v465
    %471 = vrot.lane.b32.xlu0 %v144, 127
    %v472 = vpop.permute.xlu0 %471
    %473 = vrot.lane.b32.xlu0 %v146, 127
    %v474 = vpop.permute.xlu0 %473
    %475 = vrot.lane.b32.xlu0 %v145, 127
    %v476 = vpop.permute.xlu0 %475
    %477 = vrot.lane.b32.xlu0 %v147, 127
    %v478 = vpop.permute.xlu0 %477
    %vm479 = vcmp.lt.s32.totalorder %v157, 127
    %v480 = vsel %vm479, %v472, %v476
    %v481 = vsel %vm479, %v474, %v478
    %v482 = vsel %vm479, %v476, %v472
    %v483 = vsel %vm479, %v478, %v474
    %s484 = scalar_lea.vmem %s7, 6
    %v485 = vld [vmem:[%s484] sm:$0x3]
    %v487 = vlaneseq
    %v488 = vshrl.u32 %v487, 7
    %v489 = vsub.s32 0, %v488
    %v490 = vrot.slane %v485, %v489
    %v491 = vlaneseq
    %v492 = vshrl.u32 %v491, 7
    %v493 = vsub.s32 1, %v492
    %v494 = vrot.slane %v485, %v493
    %v497 = vmul.f32 %v480, %v490
    %v498 = vmul.f32 %v482, %v494
    %v499 = vmul.f32 %v481, %v490
    %v500 = vmul.f32 %v483, %v494
    %s501 = scalar_lea.vmem [#allocation2], 48
    %v502 = vld [vmem:[%s501] sm:$0xff]
    %v503 = vld [vmem:[%s501 + $0x8] sm:$0xff]
    %v505 = vsel %vm214, %v502, 0
    %v508 = vsel %vm214, %v503, 0
    %510 = vmatprep.subr.mxu0 %v498
    %511 = vmatpush1.msra.mxu0 %v497
    %512 = vmatprep.subr.mxu0 %v500
    %513 = vmatpush1.msra.mxu0 %v499
    %514 = vmatprep.subr.mxu0 0.0
    %515 = vmatpush1.msra.mxu0 0.0
    %516 = vmatprep.subr.mxu0 0.0
    %517 = vmatpush1.msra.mxu0 0.0
    %518 = vmatprep.subr.mxu0 0.0
    %519 = vmatpush1.msra.mxu0 0.0
    %520 = vmatprep.subr.mxu0 0.0
    %521 = vmatpush1.msra.mxu0 0.0
    %522 = vmatprep.subr.mxu0 0.0
    %523 = vmatpush1.msra.mxu0 0.0
    %524 = vmatprep.subr.mxu0 0.0
    %525 = vmatpush1.msra.mxu0 0.0
    %526 = vmatprep.subr.mxu0 0.0
    %527 = vmatpush1.msra.mxu0 0.0
    %528 = vmatprep.subr.mxu0 0.0
    %529 = vmatpush1.msra.mxu0 0.0
    %530 = vmatprep.subr.mxu0 0.0
    %531 = vmatpush1.msra.mxu0 0.0
    %532 = vmatprep.subr.mxu0 0.0
    %533 = vmatpush1.msra.mxu0 0.0
    %534 = vmatprep.subr.mxu0 0.0
    %535 = vmatpush1.msra.mxu0 0.0
    %536 = vmatprep.subr.mxu0 0.0
    %537 = vmatpush1.msra.mxu0 0.0
    %538 = vmatprep.subr.mxu0 0.0
    %539 = vmatpush1.msra.mxu0 0.0
    %540 = vmatprep.subr.mxu0 0.0
    %541 = vmatpush1.msra.mxu0 0.0
    %542 = vmatprep.subr.mxu0 0.0
    %543 = vmatpush1.msra.mxu0 0.0
    %544 = vmatprep.subr.mxu0 0.0
    %545 = vmatpush1.msra.mxu0 0.0
    %546 = vmatprep.subr.mxu0 0.0
    %547 = vmatpush1.msra.mxu0 0.0
    %548 = vmatprep.subr.mxu0 0.0
    %549 = vmatpush1.msra.mxu0 0.0
    %550 = vmatprep.subr.mxu0 0.0
    %551 = vmatpush1.msra.mxu0 0.0
    %552 = vmatprep.subr.mxu0 0.0
    %553 = vmatpush1.msra.mxu0 0.0
    %554 = vmatprep.subr.mxu0 0.0
    %555 = vmatpush1.msra.mxu0 0.0
    %556 = vmatprep.subr.mxu0 0.0
    %557 = vmatpush1.msra.mxu0 0.0
    %558 = vmatprep.subr.mxu0 0.0
    %559 = vmatpush1.msra.mxu0 0.0
    %560 = vmatprep.subr.mxu0 0.0
    %561 = vmatpush1.msra.mxu0 0.0
    %562 = vmatprep.subr.mxu0 0.0
    %563 = vmatpush1.msra.mxu0 0.0
    %564 = vmatprep.subr.mxu0 0.0
    %565 = vmatpush1.msra.mxu0 0.0
    %566 = vmatprep.subr.mxu0 0.0
    %567 = vmatpush1.msra.mxu0 0.0
    %568 = vmatprep.subr.mxu0 0.0
    %569 = vmatpush1.msra.mxu0 0.0
    %570 = vmatprep.subr.mxu0 0.0
    %571 = vmatpush1.msra.mxu0 0.0
    %572 = vmatprep.subr.mxu0 0.0
    %573 = vmatpush1.msra.mxu0 0.0
    %574 = vmatprep.mubr.f32.mxu0 0.0
    %575 = vmatmul.mubr.f32.gmra.mrb[0].mxu0 %v505
    %v576 = vpop.f32.mrb[0].mxu0
    %v577 = vadd.f32 0.0, %v576
    %v578 = vpop.f32.mrb[0].mxu0
    %v579 = vadd.f32 0.0, %v578
    %580 = vmatprep.mubr.f32.mxu0 0.0
    %581 = vmatmul.mubr.f32.gmra.mrb[0].mxu0 %v508
    %v582 = vpop.f32.mrb[0].mxu0
    %v583 = vadd.f32 0.0, %v582
    %v584 = vpop.f32.mrb[0].mxu0
    %v585 = vadd.f32 0.0, %v584
    %586 = vdwg.mxu0
    %v587 = vadd.f32 %v467, %v577
    %v588 = vadd.f32 %v468, %v579
    %v589 = vadd.f32 %v469, %v583
    %v590 = vadd.f32 %v470, %v585
    %591 = vrot.lane.b32.xlu0 %v144, 126
    %v592 = vpop.permute.xlu0 %591
    %593 = vrot.lane.b32.xlu0 %v146, 126
    %v594 = vpop.permute.xlu0 %593
    %595 = vrot.lane.b32.xlu0 %v145, 126
    %v596 = vpop.permute.xlu0 %595
    %597 = vrot.lane.b32.xlu0 %v147, 126
    %v598 = vpop.permute.xlu0 %597
    %vm599 = vcmp.lt.s32.totalorder %v157, 126
    %v600 = vsel %vm599, %v592, %v596
    %v601 = vsel %vm599, %v594, %v598
    %v602 = vsel %vm599, %v596, %v592
    %v603 = vsel %vm599, %v598, %v594
    %s604 = scalar_lea.vmem %s7, 8
    %v605 = vld [vmem:[%s604] sm:$0x3]
    %v607 = vlaneseq
    %v608 = vshrl.u32 %v607, 7
    %v609 = vsub.s32 0, %v608
    %v610 = vrot.slane %v605, %v609
    %v611 = vlaneseq
    %v612 = vshrl.u32 %v611, 7
    %v613 = vsub.s32 1, %v612
    %v614 = vrot.slane %v605, %v613
    %v617 = vmul.f32 %v600, %v610
    %v618 = vmul.f32 %v602, %v614
    %v619 = vmul.f32 %v601, %v610
    %v620 = vmul.f32 %v603, %v614
    %s621 = scalar_lea.vmem [#allocation2], 64
    %v622 = vld [vmem:[%s621] sm:$0xff]
    %v623 = vld [vmem:[%s621 + $0x8] sm:$0xff]
    %v625 = vsel %vm214, %v622, 0
    %v628 = vsel %vm214, %v623, 0
    %630 = vmatprep.subr.mxu0 %v618
    %631 = vmatpush1.msra.mxu0 %v617
    %632 = vmatprep.subr.mxu0 %v620
    %633 = vmatpush1.msra.mxu0 %v619
    %634 = vmatprep.subr.mxu0 0.0
    %635 = vmatpush1.msra.mxu0 0.0
    %636 = vmatprep.subr.mxu0 0.0
    %637 = vmatpush1.msra.mxu0 0.0
    %638 = vmatprep.subr.mxu0 0.0
    %639 = vmatpush1.msra.mxu0 0.0
    %640 = vmatprep.subr.mxu0 0.0
    %641 = vmatpush1.msra.mxu0 0.0
    %642 = vmatprep.subr.mxu0 0.0
    %643 = vmatpush1.msra.mxu0 0.0
    %644 = vmatprep.subr.mxu0 0.0
    %645 = vmatpush1.msra.mxu0 0.0
    %646 = vmatprep.subr.mxu0 0.0
    %647 = vmatpush1.msra.mxu0 0.0
    %648 = vmatprep.subr.mxu0 0.0
    %649 = vmatpush1.msra.mxu0 0.0
    %650 = vmatprep.subr.mxu0 0.0
    %651 = vmatpush1.msra.mxu0 0.0
    %652 = vmatprep.subr.mxu0 0.0
    %653 = vmatpush1.msra.mxu0 0.0
    %654 = vmatprep.subr.mxu0 0.0
    %655 = vmatpush1.msra.mxu0 0.0
    %656 = vmatprep.subr.mxu0 0.0
    %657 = vmatpush1.msra.mxu0 0.0
    %658 = vmatprep.subr.mxu0 0.0
    %659 = vmatpush1.msra.mxu0 0.0
    %660 = vmatprep.subr.mxu0 0.0
    %661 = vmatpush1.msra.mxu0 0.0
    %662 = vmatprep.subr.mxu0 0.0
    %663 = vmatpush1.msra.mxu0 0.0
    %664 = vmatprep.subr.mxu0 0.0
    %665 = vmatpush1.msra.mxu0 0.0
    %666 = vmatprep.subr.mxu0 0.0
    %667 = vmatpush1.msra.mxu0 0.0
    %668 = vmatprep.subr.mxu0 0.0
    %669 = vmatpush1.msra.mxu0 0.0
    %670 = vmatprep.subr.mxu0 0.0
    %671 = vmatpush1.msra.mxu0 0.0
    %672 = vmatprep.subr.mxu0 0.0
    %673 = vmatpush1.msra.mxu0 0.0
    %674 = vmatprep.subr.mxu0 0.0
    %675 = vmatpush1.msra.mxu0 0.0
    %676 = vmatprep.subr.mxu0 0.0
    %677 = vmatpush1.msra.mxu0 0.0
    %678 = vmatprep.subr.mxu0 0.0
    %679 = vmatpush1.msra.mxu0 0.0
    %680 = vmatprep.subr.mxu0 0.0
    %681 = vmatpush1.msra.mxu0 0.0
    %682 = vmatprep.subr.mxu0 0.0
    %683 = vmatpush1.msra.mxu0 0.0
    %684 = vmatprep.subr.mxu0 0.0
    %685 = vmatpush1.msra.mxu0 0.0
    %686 = vmatprep.subr.mxu0 0.0
    %687 = vmatpush1.msra.mxu0 0.0
    %688 = vmatprep.subr.mxu0 0.0
    %689 = vmatpush1.msra.mxu0 0.0
    %690 = vmatprep.subr.mxu0 0.0
    %691 = vmatpush1.msra.mxu0 0.0
    %692 = vmatprep.subr.mxu0 0.0
    %693 = vmatpush1.msra.mxu0 0.0
    %694 = vmatprep.mubr.f32.mxu0 0.0
    %695 = vmatmul.mubr.f32.gmra.mrb[0].mxu0 %v625
    %v696 = vpop.f32.mrb[0].mxu0
    %v697 = vadd.f32 0.0, %v696
    %v698 = vpop.f32.mrb[0].mxu0
    %v699 = vadd.f32 0.0, %v698
    %700 = vmatprep.mubr.f32.mxu0 0.0
    %701 = vmatmul.mubr.f32.gmra.mrb[0].mxu0 %v628
    %v702 = vpop.f32.mrb[0].mxu0
    %v703 = vadd.f32 0.0, %v702
    %v704 = vpop.f32.mrb[0].mxu0
    %v705 = vadd.f32 0.0, %v704
    %706 = vdwg.mxu0
    %v707 = vadd.f32 %v587, %v697
    %v708 = vadd.f32 %v588, %v699
    %v709 = vadd.f32 %v589, %v703
    %v710 = vadd.f32 %v590, %v705
    %v711 = vld [vmem:[%s4] sm:$0xff]
    %v712 = vld [vmem:[%s4 + $0x8] sm:$0xff]
    %714 = vset.pattern.permute.xlu0 0
    %715 = vperm.xlu0 %714, %v711
    %v716 = vpop.permute.xlu0 %715
    %719 = vset.pattern.permute.xlu0 0
    %720 = vperm.xlu0 %719, %v712
    %v721 = vpop.permute.xlu0 %720
    %v723 = vadd.f32 %v707, %v716
    %v724 = vadd.f32 %v708, %v716
    %v725 = vadd.f32 %v709, %v721
    %v726 = vadd.f32 %v710, %v721
    %v727 = vtanh.pop %v723
    %v728 = vtanh.pop %v724
    %v729 = vtanh.pop %v725
    %v730 = vtanh.pop %v726
    %v731 = vld [vmem:[%s5] sm:$0xff]
    %v733 = vsel %vm214, %v731, 0
    %735 = vmatprep.subr.mxu0 %v728
    %736 = vmatpush1.msra.mxu0 %v727
    %737 = vmatprep.subr.mxu0 %v730
    %738 = vmatpush1.msra.mxu0 %v729
    %739 = vmatprep.subr.mxu0 0.0
    %740 = vmatpush1.msra.mxu0 0.0
    %741 = vmatprep.subr.mxu0 0.0
    %742 = vmatpush1.msra.mxu0 0.0
    %743 = vmatprep.subr.mxu0 0.0
    %744 = vmatpush1.msra.mxu0 0.0
    %745 = vmatprep.subr.mxu0 0.0
    %746 = vmatpush1.msra.mxu0 0.0
    %747 = vmatprep.subr.mxu0 0.0
    %748 = vmatpush1.msra.mxu0 0.0
    %749 = vmatprep.subr.mxu0 0.0
    %750 = vmatpush1.msra.mxu0 0.0
    %751 = vmatprep.subr.mxu0 0.0
    %752 = vmatpush1.msra.mxu0 0.0
    %753 = vmatprep.subr.mxu0 0.0
    %754 = vmatpush1.msra.mxu0 0.0
    %755 = vmatprep.subr.mxu0 0.0
    %756 = vmatpush1.msra.mxu0 0.0
    %757 = vmatprep.subr.mxu0 0.0
    %758 = vmatpush1.msra.mxu0 0.0
    %759 = vmatprep.subr.mxu0 0.0
    %760 = vmatpush1.msra.mxu0 0.0
    %761 = vmatprep.subr.mxu0 0.0
    %762 = vmatpush1.msra.mxu0 0.0
    %763 = vmatprep.subr.mxu0 0.0
    %764 = vmatpush1.msra.mxu0 0.0
    %765 = vmatprep.subr.mxu0 0.0
    %766 = vmatpush1.msra.mxu0 0.0
    %767 = vmatprep.subr.mxu0 0.0
    %768 = vmatpush1.msra.mxu0 0.0
    %769 = vmatprep.subr.mxu0 0.0
    %770 = vmatpush1.msra.mxu0 0.0
    %771 = vmatprep.subr.mxu0 0.0
    %772 = vmatpush1.msra.mxu0 0.0
    %773 = vmatprep.subr.mxu0 0.0
    %774 = vmatpush1.msra.mxu0 0.0
    %775 = vmatprep.subr.mxu0 0.0
    %776 = vmatpush1.msra.mxu0 0.0
    %777 = vmatprep.subr.mxu0 0.0
    %778 = vmatpush1.msra.mxu0 0.0
    %779 = vmatprep.subr.mxu0 0.0
    %780 = vmatpush1.msra.mxu0 0.0
    %781 = vmatprep.subr.mxu0 0.0
    %782 = vmatpush1.msra.mxu0 0.0
    %783 = vmatprep.subr.mxu0 0.0
    %784 = vmatpush1.msra.mxu0 0.0
    %785 = vmatprep.subr.mxu0 0.0
    %786 = vmatpush1.msra.mxu0 0.0
    %787 = vmatprep.subr.mxu0 0.0
    %788 = vmatpush1.msra.mxu0 0.0
    %789 = vmatprep.subr.mxu0 0.0
    %790 = vmatpush1.msra.mxu0 0.0
    %791 = vmatprep.subr.mxu0 0.0
    %792 = vmatpush1.msra.mxu0 0.0
    %793 = vmatprep.subr.mxu0 0.0
    %794 = vmatpush1.msra.mxu0 0.0
    %795 = vmatprep.subr.mxu0 0.0
    %796 = vmatpush1.msra.mxu0 0.0
    %797 = vmatprep.subr.mxu0 0.0
    %798 = vmatpush1.msra.mxu0 0.0
    %799 = vmatprep.mubr.f32.mxu0 0.0
    %800 = vmatmul.mubr.f32.gmra.mrb[0].mxu0 %v733
    %v801 = vpop.f32.mrb[0].mxu0
    %v802 = vadd.f32 0.0, %v801
    %v803 = vpop.f32.mrb[0].mxu0
    %v804 = vadd.f32 0.0, %v803
    %805 = vdwg.mxu0
    %v806 = vadd.f32 %v44, %v802
    %v807 = vadd.f32 %v45, %v804
    %v808 = vld [vmem:[%s6] sm:$0xff]
    %810 = vset.pattern.permute.xlu0 0
    %811 = vperm.xlu0 %810, %v808
    %v812 = vpop.permute.xlu0 %811
    %v814 = vadd.f32 %v806, %v812
    %v815 = vadd.f32 %v807, %v812
    %816 = vst [vmem:[#allocation5] sm:$0xff] %v814
    %817 = vst [vmem:[#allocation5 + $0x8] sm:$0xff] %v815
    // Predicated region
    $region38: #{tpu_custom_call.1} parent=1 // pred_check
      _
    $region39: #{tpu_custom_call.1} parent=1 // pred_check_branch
      %819 = sbr.rel (0) target = $region41
    $region40: #{tpu_custom_call.1} parent=1 // pred_region
      %s821 = ssub.s32 256, 256
      %822 = vsyncadd [#allocation4], %s821
      %s824 = sshll.u32 [#allocation5], 4
      %s825 = int_to_ptr.vmem [resolvable:$true] %s824
      %827 = dma.vmem_to_hbm [thread:$0]  %s825, 256, %s8, [#allocation4]
    $region41: #{tpu_custom_call.1} parent=1 // pred_fallthru
      _
    // Predicated region
    $region42: #{tpu_custom_call.1} parent=1 // pred_check
      _
    $region43: #{tpu_custom_call.1} parent=1 // pred_check_branch
      %829 = sbr.rel (0) target = $region45
    $region44: #{tpu_custom_call.1} parent=1 // pred_region
      %830 = dma.done [#allocation4], 256
    $region45: #{tpu_custom_call.1} parent=1 // pred_fallthru
      _
    %831 = vsyncpa [#allocation3], 1
    %832 = vsyncpa [#allocation4], 1

</llo_original>
